<compile_context>
chip_gen: v7x
topology: tpu7x:2x2x1
jax: 0.10.0
libtpu: 0.0.40
codegen_flags: <defaults>
</compile_context>

<pallas_src>
import functools

import jax
import jax.numpy as jnp
from jax import lax
from jax.experimental import pallas as pl
from jax.experimental.pallas import tpu as pltpu


def _kd_loss_kernel(x_ref, t_ref, o_ref, acc_ref, *,
                    inv_temp: float, scale: float,
                    n_rows: int, tile_batch: int, steps: int):
    """Processes one (TB, C) tile of student/teacher logits.

    Accumulates partial KL sums into a lane-dense (8, C) f32 scratch via pure
    VPU vreg adds; the single cross-lane reduce and the T**2/N scaling run only
    on the last grid step of this core.
    """
    p = pl.program_id(0)
    i = pl.program_id(1)

    @pl.when(i == 0)
    def _():
        acc_ref[...] = jnp.zeros_like(acc_ref)

    x = x_ref[...].astype(jnp.float32) * inv_temp    # input / T
    t = t_ref[...].astype(jnp.float32) * inv_temp    # target / T

    x_max = jnp.max(x, axis=-1, keepdims=True)
    t_max = jnp.max(t, axis=-1, keepdims=True)
    xs = x - x_max
    ts = t - t_max
    xe = jnp.exp(xs)                                 # EUP
    te = jnp.exp(ts)                                 # EUP
    x_sum = jnp.sum(xe, axis=-1, keepdims=True)      # XLU
    t_sum = jnp.sum(te, axis=-1, keepdims=True)      # XLU

    # q * (log q - log p) with the logs folded into per-row terms:
    #   log q - log p = (ts - xs) + (log x_sum - log t_sum)
    #   q             = te / t_sum
    inv_t_sum = 1.0 / t_sum                                       # (TB, 1), exact
    row_addend = (jnp.log(x_sum) - jnp.log(t_sum)) * inv_t_sum    # (TB, 1)
    contrib = te * ((ts - xs) * inv_t_sum + row_addend)           # (TB, C)

    tb, c = contrib.shape
    row_offset = (p * steps + i) * tile_batch        # logical (unclamped) rows
    rows_left = n_rows - row_offset

    def _accumulate(vals):
        # Sublane-group reduce: pure VPU vreg adds into the lane-dense (8, C)
        # accumulator (no cross-lane traffic until the epilogue).
        acc_ref[...] += jnp.sum(vals.reshape(tb // 8, 8, c), axis=0)

    @pl.when(rows_left >= tb)                        # full tile: zero masking cost
    def _():
        _accumulate(contrib)

    @pl.when(rows_left < tb)                         # ragged (or empty) tile
    def _():
        row_ids = lax.broadcasted_iota(jnp.int32, (tb, 1), 0)
        _accumulate(jnp.where(row_ids < rows_left, contrib, 0.0))

    @pl.when(i == pl.num_programs(1) - 1)
    def _():
        total = jnp.sum(acc_ref[...]) * scale        # single XLU reduce + scale
        o_ref[...] = jnp.full(o_ref.shape, total, dtype=jnp.float32)


def _vmem_capacity_bytes() -> int:
    try:
        return int(getattr(pltpu.get_tpu_info(), "vmem_capacity_bytes", 64 << 20))
    except Exception:  # pragma: no cover - conservative fallback
        return 64 << 20


def _detect_num_tensorcores() -> int:
    """Best-effort TensorCore count (2 only on dual-TC chips). Defaults to 1."""
    try:
        info = pltpu.get_tpu_info()
    except Exception:
        return 1
    for attr in ("num_tensorcores", "tensorcore_count", "num_cores_per_chip"):
        v = getattr(info, attr, None)
        if isinstance(v, int) and 1 <= v <= 4:
            return v
    return 1


def _pick_tile_batch(n_rows: int, c: int, itemsize: int,
                     num_parallel: int, vmem_cap: int) -> int:
    """Largest batch tile s.t. the streamed DMA tiles (2 inputs x 2 pipeline
    buffers) PLUS ~8 live f32 (TB, C) intermediates fit in ~40% of VMEM."""
    per_row = (4 * itemsize + 8 * 4) * c             # DMA tiles + f32 temporaries
    budget = (vmem_cap * 2) // 5                     # ~40% of physical VMEM
    tb = budget // max(per_row, 1)
    rows_per_core = -(-n_rows // num_parallel)       # don't over-tile tiny batches
    tb = min(tb, max(rows_per_core, 8))
    tb = min(tb, 512 if c >= 8192 else 1024)         # 512-1024 rows ~= HBM roofline
    align = 8 if itemsize >= 4 else 16               # f32 vs bf16 sublane packing
    tb = max(align, (tb // align) * align)
    return int(tb)
    # TODO(synk): add a class-axis (C) tiling path (online-softmax running
    # max/sum) for vocab-scale C where a full (TB, C) block cannot fit VMEM.


def kd_loss(input_logits, target_logits, temp_factor: float, *,
            num_parallel: int | None = None):
    """Pallas implementation of KDLoss.forward. Returns a float32 scalar."""
    assert input_logits.shape == target_logits.shape
    assert input_logits.ndim == 2
    n, c = input_logits.shape
    assert n >= 1

    if num_parallel is None:
        num_parallel = _detect_num_tensorcores()     # 1 on v5e/v6e; pass 2 on v7x
    num_parallel = max(1, int(num_parallel))

    itemsize = jnp.dtype(input_logits.dtype).itemsize
    vmem_cap = _vmem_capacity_bytes()
    tile_batch = _pick_tile_batch(n, c, itemsize, num_parallel, vmem_cap)

    total_blocks = -(-n // tile_batch)               # blocks with >= 1 valid row
    steps = -(-total_blocks // num_parallel)         # sequential steps per core
    last_block = total_blocks - 1

    # Contiguous per-core block streaming. Clamp so a (rare) fully-out-of-range
    # iteration re-reads the last valid block; its contribution is masked to
    # zero in the kernel, so no wrapper-side padding is needed.
    def in_map(p, i):
        return (jnp.minimum(p * steps + i, last_block), 0)

    # Raise scoped VMEM to cover the double-buffered input tiles plus the f32
    # intermediates, capped below physical VMEM (64 MiB/TC on v7x).
    vmem_needed = (4 * tile_batch * c * itemsize     # 2 inputs x 2 buffers
                   + 8 * tile_batch * c * 4          # live f32 intermediates
                   + 8 * c * 4 + num_parallel * 8 * 128 * 4)
    vmem_limit = int(min((vmem_cap * 9) // 10,
                         max(32 << 20, vmem_needed + (4 << 20))))

    kernel = functools.partial(
        _kd_loss_kernel,
        inv_temp=1.0 / float(temp_factor),
        scale=float(temp_factor) ** 2 / float(n),    # divide by ORIGINAL batch size
        n_rows=n, tile_batch=tile_batch, steps=steps)

    if num_parallel > 1:
        # Only CORE_PARALLEL actually splits the grid across TensorCores (v7x).
        sem0 = getattr(pltpu, "CORE_PARALLEL", "parallel")
    else:
        sem0 = "arbitrary"

    out = pl.pallas_call(
        kernel,
        out_shape=jax.ShapeDtypeStruct((num_parallel, 8, 128), jnp.float32),
        grid_spec=pltpu.PrefetchScalarGridSpec(
            num_scalar_prefetch=0,
            grid=(num_parallel, steps),
            in_specs=[
                pl.BlockSpec((tile_batch, c), in_map),
                pl.BlockSpec((tile_batch, c), in_map),
            ],
            # Each core gets its OWN output block (no cross-core race); within
            # a core the block is revisited -> accumulator pattern.
            out_specs=pl.BlockSpec((1, 8, 128), lambda p, i: (p, 0, 0)),
            scratch_shapes=[pltpu.VMEM((8, c), jnp.float32)],
        ),
        compiler_params=pltpu.CompilerParams(
            dimension_semantics=(sem0, "arbitrary"),
            vmem_limit_bytes=vmem_limit,
        ),
    )(input_logits, target_logits)

    # Sum the (already-scaled) per-core partials.
    return jnp.sum(out[:, 0, 0])


def kd_loss_reference(input_logits, target_logits, temp_factor: float):
    """Pure-JAX reference (mirrors the PyTorch module), computed in f32."""
    n = input_logits.shape[0]
    x = input_logits.astype(jnp.float32)
    t = target_logits.astype(jnp.float32)
    log_p = jax.nn.log_softmax(x / temp_factor, axis=1)
    q = jax.nn.softmax(t / temp_factor, axis=1)
    log_q = jax.nn.log_softmax(t / temp_factor, axis=1)
    return jnp.sum(q * (log_q - log_p)) * temp_factor ** 2 / n


if __name__ == "__main__":
    temp_factor = 2.0
    N, C = 16, 128  # batch, num_classes

    key = jax.random.PRNGKey(0)
    k1, k2 = jax.random.split(key)
    student_logits = jax.random.normal(k1, (N, C), dtype=jnp.float32)
    teacher_logits = jax.random.normal(k2, (N, C), dtype=jnp.float32)

    loss = jax.block_until_ready(kd_loss(student_logits, teacher_logits, temp_factor))
    ref = kd_loss_reference(student_logits, teacher_logits, temp_factor)
    assert jnp.allclose(loss, ref, rtol=1e-4, atol=1e-5), (loss, ref)

    # Ragged batch (N not a multiple of the tile) -> exercises the in-kernel mask
    # (no jnp.pad pass anymore).
    loss_odd = jax.block_until_ready(
        kd_loss(student_logits[:13], teacher_logits[:13], temp_factor))
    ref_odd = kd_loss_reference(student_logits[:13], teacher_logits[:13], temp_factor)
    assert jnp.allclose(loss_odd, ref_odd, rtol=1e-4, atol=1e-5), (loss_odd, ref_odd)

    # Native bf16 logits stream without any wrapper-side cast (kernel upcasts).
    student_bf = student_logits.astype(jnp.bfloat16)
    teacher_bf = teacher_logits.astype(jnp.bfloat16)
    loss_bf = jax.block_until_ready(kd_loss(student_bf, teacher_bf, temp_factor))
    ref_bf = kd_loss_reference(student_bf, teacher_bf, temp_factor)
    assert jnp.allclose(loss_bf, ref_bf, rtol=1e-3, atol=1e-4), (loss_bf, ref_bf)

    print("KERNEL_OK")
</pallas_src>

<mosaic_0001>
module attributes {stable_mosaic.version = 11 : i64} {
  func.func @_kd_loss_kernel(%arg0: i32, %arg1: i32, %arg2: memref<16x128xf32, #tpu.memory_space<vmem>>, %arg3: memref<16x128xf32, #tpu.memory_space<vmem>>, %arg4: memref<1x8x128xf32, #tpu.memory_space<vmem>>, %arg5: memref<8x128xf32, #tpu.memory_space<vmem>>) attributes {dimension_semantics = [#tpu.dimension_semantics<arbitrary>, #tpu.dimension_semantics<arbitrary>], iteration_bounds = array<i64: 1, 1>, scalar_prefetch = 0 : i64, scratch_operands = 1 : i64, tpu.core_type = #tpu.core_type<tc>, window_params = [{transform_indices = @transform_0, window_bounds = array<i64: 16, 128>}, {transform_indices = @transform_1, window_bounds = array<i64: 16, 128>}, {transform_indices = @transform_2, window_bounds = array<i64: 1, 8, 128>}]} {
    %c0_i32 = arith.constant 0 : i32
    %0 = arith.cmpi eq, %arg1, %c0_i32 : i32
    %1 = arith.extui %0 : i1 to i32
    %c0_i32_0 = arith.constant 0 : i32
    %2 = arith.cmpi ne, %1, %c0_i32_0 : i32
    scf.if %2 {
      %cst_17 = arith.constant 0.000000e+00 : f32
      %48 = vector.broadcast %cst_17 : f32 to vector<8x128xf32>
      %c0_18 = arith.constant 0 : index
      %c0_19 = arith.constant 0 : index
      %49 = vector.load %arg5[%c0_18, %c0_19] : memref<8x128xf32, #tpu.memory_space<vmem>>, vector<8x128xf32>
      tpu.vector_store %arg5[%c0_18, %c0_19], %48 {strides = array<i32>} : memref<8x128xf32, #tpu.memory_space<vmem>>, vector<8x128xf32>,
    } else {
    }
    %c0 = arith.constant 0 : index
    %c0_1 = arith.constant 0 : index
    %3 = vector.load %arg2[%c0, %c0_1] : memref<16x128xf32, #tpu.memory_space<vmem>>, vector<16x128xf32>
    %cst = arith.constant 5.000000e-01 : f32
    %4 = vector.broadcast %cst : f32 to vector<16x128xf32>
    %5 = arith.mulf %3, %4 : vector<16x128xf32>
    %c0_2 = arith.constant 0 : index
    %c0_3 = arith.constant 0 : index
    %6 = vector.load %arg3[%c0_2, %c0_3] : memref<16x128xf32, #tpu.memory_space<vmem>>, vector<16x128xf32>
    %cst_4 = arith.constant 5.000000e-01 : f32
    %7 = vector.broadcast %cst_4 : f32 to vector<16x128xf32>
    %8 = arith.mulf %6, %7 : vector<16x128xf32>
    %cst_5 = arith.constant dense<0xFF800000> : vector<16xf32>
    %9 = vector.multi_reduction <maximumf>, %5, %cst_5 [1] : vector<16x128xf32> to vector<16xf32>
    %10 = vector.shape_cast %9 : vector<16xf32> to vector<16x1xf32>
    %cst_6 = arith.constant dense<0xFF800000> : vector<16xf32>
    %11 = vector.multi_reduction <maximumf>, %8, %cst_6 [1] : vector<16x128xf32> to vector<16xf32>
    %12 = vector.shape_cast %11 : vector<16xf32> to vector<16x1xf32>
    %13 = vector.broadcast %10 : vector<16x1xf32> to vector<16x128xf32>
    %14 = arith.subf %5, %13 : vector<16x128xf32>
    %15 = vector.broadcast %12 : vector<16x1xf32> to vector<16x128xf32>
    %16 = arith.subf %8, %15 : vector<16x128xf32>
    %17 = math.exp %14 : vector<16x128xf32>
    %18 = math.exp %16 : vector<16x128xf32>
    %cst_7 = arith.constant dense<0.000000e+00> : vector<16xf32>
    %19 = vector.multi_reduction <add>, %17, %cst_7 [1] : vector<16x128xf32> to vector<16xf32>
    %20 = vector.shape_cast %19 : vector<16xf32> to vector<16x1xf32>
    %cst_8 = arith.constant dense<0.000000e+00> : vector<16xf32>
    %21 = vector.multi_reduction <add>, %18, %cst_8 [1] : vector<16x128xf32> to vector<16xf32>
    %22 = vector.shape_cast %21 : vector<16xf32> to vector<16x1xf32>
    %cst_9 = arith.constant 1.000000e+00 : f32
    %23 = vector.broadcast %cst_9 : f32 to vector<16x1xf32>
    %24 = arith.divf %23, %22 : vector<16x1xf32>
    %25 = math.log %20 : vector<16x1xf32>
    %26 = math.log %22 : vector<16x1xf32>
    %27 = arith.subf %25, %26 : vector<16x1xf32>
    %28 = arith.mulf %27, %24 : vector<16x1xf32>
    %29 = arith.subf %16, %14 : vector<16x128xf32>
    %30 = vector.broadcast %24 : vector<16x1xf32> to vector<16x128xf32>
    %31 = arith.mulf %29, %30 : vector<16x128xf32>
    %32 = vector.broadcast %28 : vector<16x1xf32> to vector<16x128xf32>
    %33 = arith.addf %31, %32 : vector<16x128xf32>
    %34 = arith.mulf %18, %33 : vector<16x128xf32>
    %c1_i32 = arith.constant 1 : i32
    %35 = arith.muli %arg0, %c1_i32 : i32
    %36 = arith.addi %35, %arg1 : i32
    %c16_i32 = arith.constant 16 : i32
    %37 = arith.muli %36, %c16_i32 : i32
    %c16_i32_10 = arith.constant 16 : i32
    %38 = arith.subi %c16_i32_10, %37 : i32
    %c16_i32_11 = arith.constant 16 : i32
    %39 = arith.cmpi sge, %38, %c16_i32_11 : i32
    %40 = arith.extui %39 : i1 to i32
    %c0_i32_12 = arith.constant 0 : i32
    %41 = arith.cmpi ne, %40, %c0_i32_12 : i32
    scf.if %41 {
      %c0_17 = arith.constant 0 : index
      %c0_18 = arith.constant 0 : index
      %48 = vector.load %arg5[%c0_17, %c0_18] : memref<8x128xf32, #tpu.memory_space<vmem>>, vector<8x128xf32>
      %49 = vector.shape_cast %34 : vector<16x128xf32> to vector<2x8x128xf32>
      %cst_19 = arith.constant dense<0.000000e+00> : vector<8x128xf32>
      %50 = vector.multi_reduction <add>, %49, %cst_19 [0] : vector<2x8x128xf32> to vector<8x128xf32>
      %51 = arith.addf %48, %50 : vector<8x128xf32>
      %c0_20 = arith.constant 0 : index
      %c0_21 = arith.constant 0 : index
      %52 = vector.load %arg5[%c0_20, %c0_21] : memref<8x128xf32, #tpu.memory_space<vmem>>, vector<8x128xf32>
      tpu.vector_store %arg5[%c0_20, %c0_21], %51 {strides = array<i32>} : memref<8x128xf32, #tpu.memory_space<vmem>>, vector<8x128xf32>,
    } else {
    }
    %c16_i32_13 = arith.constant 16 : i32
    %42 = arith.cmpi slt, %38, %c16_i32_13 : i32
    %43 = arith.extui %42 : i1 to i32
    %c0_i32_14 = arith.constant 0 : i32
    %44 = arith.cmpi ne, %43, %c0_i32_14 : i32
    scf.if %44 {
      %48 = tpu.iota {dimensions = array<i32: 0>} : vector<16x1xi32>
      %49 = vector.broadcast %38 : i32 to vector<16x1xi32>
      %50 = arith.cmpi slt, %48, %49 : vector<16x1xi32>
      %cst_17 = arith.constant 0.000000e+00 : f32
      %51 = vector.shape_cast %50 : vector<16x1xi1> to vector<16x1xi1>
      %52 = vector.broadcast %51 : vector<16x1xi1> to vector<16x128xi1>
      %53 = vector.broadcast %cst_17 : f32 to vector<16x128xf32>
      %54 = arith.select %52, %34, %53 : vector<16x128xi1>, vector<16x128xf32>
      %c0_18 = arith.constant 0 : index
      %c0_19 = arith.constant 0 : index
      %55 = vector.load %arg5[%c0_18, %c0_19] : memref<8x128xf32, #tpu.memory_space<vmem>>, vector<8x128xf32>
      %56 = vector.shape_cast %54 : vector<16x128xf32> to vector<2x8x128xf32>
      %cst_20 = arith.constant dense<0.000000e+00> : vector<8x128xf32>
      %57 = vector.multi_reduction <add>, %56, %cst_20 [0] : vector<2x8x128xf32> to vector<8x128xf32>
      %58 = arith.addf %55, %57 : vector<8x128xf32>
      %c0_21 = arith.constant 0 : index
      %c0_22 = arith.constant 0 : index
      %59 = vector.load %arg5[%c0_21, %c0_22] : memref<8x128xf32, #tpu.memory_space<vmem>>, vector<8x128xf32>
      tpu.vector_store %arg5[%c0_21, %c0_22], %58 {strides = array<i32>} : memref<8x128xf32, #tpu.memory_space<vmem>>, vector<8x128xf32>,
    } else {
    }
    %c0_i32_15 = arith.constant 0 : i32
    %45 = arith.cmpi eq, %arg1, %c0_i32_15 : i32
    %46 = arith.extui %45 : i1 to i32
    %c0_i32_16 = arith.constant 0 : i32
    %47 = arith.cmpi ne, %46, %c0_i32_16 : i32
    scf.if %47 {
      %c0_17 = arith.constant 0 : index
      %c0_18 = arith.constant 0 : index
      %48 = vector.load %arg5[%c0_17, %c0_18] : memref<8x128xf32, #tpu.memory_space<vmem>>, vector<8x128xf32>
      %49 = vector.shape_cast %48 : vector<8x128xf32> to vector<1x8x128xf32>
      %cst_19 = arith.constant dense<0.000000e+00> : vector<1xf32>
      %50 = vector.multi_reduction <add>, %49, %cst_19 [1, 2] : vector<1x8x128xf32> to vector<1xf32>
      %51 = vector.shape_cast %50 : vector<1xf32> to vector<1x1x1xf32>
      %52 = vector.extract %51[0, 0, 0] : f32 from vector<1x1x1xf32>
      %cst_20 = arith.constant 2.500000e-01 : f32
      %53 = arith.mulf %52, %cst_20 : f32
      %54 = vector.broadcast %53 : f32 to vector<1x8x128xf32>
      %c0_21 = arith.constant 0 : index
      %c0_22 = arith.constant 0 : index
      %c0_23 = arith.constant 0 : index
      %55 = vector.load %arg4[%c0_21, %c0_22, %c0_23] : memref<1x8x128xf32, #tpu.memory_space<vmem>>, vector<1x8x128xf32>
      tpu.vector_store %arg4[%c0_21, %c0_22, %c0_23], %54 {strides = array<i32>} : memref<1x8x128xf32, #tpu.memory_space<vmem>>, vector<1x8x128xf32>,
    } else {
    }
    return
  }
  func.func @transform_0(%arg0: i32, %arg1: i32) -> (i32, i32) {
    %c1_i32 = arith.constant 1 : i32
    %0 = arith.muli %arg0, %c1_i32 : i32
    %1 = arith.addi %0, %arg1 : i32
    %c0_i32 = arith.constant 0 : i32
    %2 = arith.minsi %1, %c0_i32 : i32
    %c0_i32_0 = arith.constant 0 : i32
    %c0_i32_1 = arith.constant 0 : i32
    return %2, %c0_i32_0 : i32, i32
  }
  func.func @transform_1(%arg0: i32, %arg1: i32) -> (i32, i32) {
    %c1_i32 = arith.constant 1 : i32
    %0 = arith.muli %arg0, %c1_i32 : i32
    %1 = arith.addi %0, %arg1 : i32
    %c0_i32 = arith.constant 0 : i32
    %2 = arith.minsi %1, %c0_i32 : i32
    %c0_i32_0 = arith.constant 0 : i32
    %c0_i32_1 = arith.constant 0 : i32
    return %2, %c0_i32_0 : i32, i32
  }
  func.func @transform_2(%arg0: i32, %arg1: i32) -> (i32, i32, i32) {
    %c0_i32 = arith.constant 0 : i32
    %c0_i32_0 = arith.constant 0 : i32
    %c0_i32_1 = arith.constant 0 : i32
    return %arg0, %c0_i32, %c0_i32_0 : i32, i32, i32
  }
}

</mosaic_0001>

<llo_original>
// kernel: tpu_custom_call.1
$region0: #{tpu_custom_call.1}
  #allocation0 [shape = 'u32[]', space=smem, size = 0x4, offset = 0x4, fixed_abs, tag = 'smem constant byte address 0x4 - core index']
  #allocation1 [shape = 'u32[144,128]{1,0:T(1,128)}', space=vmem, size = 0x12000, scoped, tag = 'internal scratch']
  #allocation2 [shape = 'f32[8,128]{1,0:T(8,128)}', space=vmem, size = 0x1000, scoped, tag = 'scratch operand']
  %s0 = inlined_call_operand.hbm [shape: f32[16,128], index: 0, kind: input, shape index: {}]
  %s1 = inlined_call_operand.hbm [shape: f32[16,128], index: 1, kind: input, shape index: {}]
  %s2 = inlined_call_operand.hbm [shape: f32[1,8,128], index: 2, kind: output, shape index: {}]
  %s3 = sld [smem:[#allocation0]]
  $region42: #{tpu_custom_call.1} parent=0
    _
  %s5 = ssub.s32 1, %s3
  %s6 = scalar_select 0, %s5, %s3
  $region1: #{tpu_custom_call.1} parent=0
    #allocation3 [shape = 'u8[8192]{0}', space=vmem, size = 0x2000, scoped, tag = 'input window, operand 0, single buffered']
    #allocation4 [shape = 's32[1]{0}', space=sflag, size = 0x4, scoped, tag = 'scoped memory for tpu_custom_call.1']
    #allocation5 [shape = 's32[1]{0}', space=sflag, size = 0x4, scoped, tag = 'scoped memory for tpu_custom_call.1']
    #allocation6 [shape = 'u8[8192]{0}', space=vmem, size = 0x2000, scoped, tag = 'input window, operand 1, single buffered']
    #allocation7 [shape = 's32[1]{0}', space=sflag, size = 0x4, scoped, tag = 'scoped memory for tpu_custom_call.1']
    #allocation8 [shape = 'u8[4096]{0}', space=vmem, size = 0x1000, scoped, tag = 'output window, operand 0, single buffered']
    %7 = vsyncpa [#allocation4], 0
    %8 = vsyncpa [#allocation7], 0
    %9 = vsyncpa [#allocation5], 0
    // Predicated region
    $region2: #{tpu_custom_call.1} parent=1 // pred_check
      _
    $region3: #{tpu_custom_call.1} parent=1 // pred_check_branch
      %11 = sbr.rel (0) target = $region5
    $region4: #{tpu_custom_call.1} parent=1 // pred_region
      %s12 = sadd.s32 0, 0
      %p13 = scmp.lt.s32.totalorder %s12, 0
      %s14 = scalar_select %p13, %s12, 0
      %s15 = smul.u32 2, %s14
      %s17 = ssub.s32 256, 256
      %18 = vsyncadd [#allocation4], %s17
      %s19 = smul.addr %s15, 128
      %s20 = scalar_lea.hbm %s0, %s19
      %s21 = sshll.u32 [#allocation3], 4
      %s22 = int_to_ptr.vmem [resolvable:$true] %s21
      %27 = dma.hbm_to_vmem [thread:$0]  %s20, 256, %s22, [#allocation4], 128, 128, 8
    $region5: #{tpu_custom_call.1} parent=1 // pred_fallthru
      _
    // Predicated region
    $region6: #{tpu_custom_call.1} parent=1 // pred_check
      _
    $region7: #{tpu_custom_call.1} parent=1 // pred_check_branch
      %29 = sbr.rel (0) target = $region9
    $region8: #{tpu_custom_call.1} parent=1 // pred_region
      %s30 = sadd.s32 0, 0
      %p31 = scmp.lt.s32.totalorder %s30, 0
      %s32 = scalar_select %p31, %s30, 0
      %s33 = smul.u32 2, %s32
      %s35 = ssub.s32 256, 256
      %36 = vsyncadd [#allocation7], %s35
      %s37 = smul.addr %s33, 128
      %s38 = scalar_lea.hbm %s1, %s37
      %s39 = sshll.u32 [#allocation6], 4
      %s40 = int_to_ptr.vmem [resolvable:$true] %s39
      %45 = dma.hbm_to_vmem [thread:$0]  %s38, 256, %s40, [#allocation7], 128, 128, 8
    $region9: #{tpu_custom_call.1} parent=1 // pred_fallthru
      _
    // Predicated region
    $region10: #{tpu_custom_call.1} parent=1 // pred_check
      _
    $region11: #{tpu_custom_call.1} parent=1 // pred_check_branch
      %47 = sbr.rel (0) target = $region13
    $region12: #{tpu_custom_call.1} parent=1 // pred_region
      %48 = dma.done [#allocation4], 256
    $region13: #{tpu_custom_call.1} parent=1 // pred_fallthru
      _
    // Predicated region
    $region14: #{tpu_custom_call.1} parent=1 // pred_check
      _
    $region15: #{tpu_custom_call.1} parent=1 // pred_check_branch
      %50 = sbr.rel (0) target = $region17
    $region16: #{tpu_custom_call.1} parent=1 // pred_region
      %51 = dma.done [#allocation7], 256
    $region17: #{tpu_custom_call.1} parent=1 // pred_fallthru
      _
    %s52 = sadd.s32 0, 0
    %p53 = scmp.lt.s32.totalorder %s52, 0
    %s54 = scalar_select %p53, %s52, 0
    %s55 = smul.u32 2, %s54
    %s56 = sadd.s32 0, 0
    %p57 = scmp.lt.s32.totalorder %s56, 0
    %s58 = scalar_select %p57, %s56, 0
    %s59 = smul.u32 2, %s58
    %p60 = scmp.eq.s32.totalorder 0, 0
    // Predicated region
    $region18: #{tpu_custom_call.1} parent=1 // pred_check
      %p61 = pneg %p60
    $region19: #{tpu_custom_call.1} parent=1 // pred_check_branch
      %63 = sbr.rel (%p61) target = $region21
    $region20: #{tpu_custom_call.1} parent=1 // pred_region
      %64 = vst [vmem:[#allocation2] sm:$0xff] 0.0
    $region21: #{tpu_custom_call.1} parent=1 // pred_fallthru
      _
    %v65 = vld [vmem:[#allocation3] sm:$0xff]
    %v66 = vld [vmem:[#allocation3 + $0x8] sm:$0xff]
    %v67 = vmul.f32 %v65, 0.5
    %v68 = vmul.f32 %v66, 0.5
    %v69 = vld [vmem:[#allocation6] sm:$0xff]
    %v70 = vld [vmem:[#allocation6 + $0x8] sm:$0xff]
    %v71 = vmul.f32 %v69, 0.5
    %v72 = vmul.f32 %v70, 0.5
    %73 = vmax.xlane.f32.xlu0 %v67
    %v74 = vpop.xlane.xlu0 %73
    %75 = vmax.xlane.f32.xlu0 %v68
    %v76 = vpop.xlane.xlu0 %75
    %77 = vmax.xlane.f32.xlu0 %v71
    %v78 = vpop.xlane.xlu0 %77
    %79 = vmax.xlane.f32.xlu0 %v72
    %v80 = vpop.xlane.xlu0 %79
    %v81 = vsub.f32 %v67, %v74
    %v82 = vsub.f32 %v68, %v76
    %v83 = vsub.f32 %v71, %v78
    %v84 = vsub.f32 %v72, %v80
    %v85 = vmul.f32 %v81, 1.442695
    %v86 = vpow.pop %v85
    %v87 = vmul.f32 %v82, 1.442695
    %v88 = vpow.pop %v87
    %v89 = vmul.f32 %v83, 1.442695
    %v90 = vpow.pop %v89
    %v91 = vmul.f32 %v84, 1.442695
    %v92 = vpow.pop %v91
    %93 = vadd.xlane.f32.xlu0 %v86
    %v94 = vpop.xlane.xlu0 %93
    %95 = vadd.xlane.f32.xlu0 %v88
    %v96 = vpop.xlane.xlu0 %95
    %97 = vadd.xlane.f32.xlu0 %v90
    %v98 = vpop.xlane.xlu0 %97
    %99 = vadd.xlane.f32.xlu0 %v92
    %v100 = vpop.xlane.xlu0 %99
    %v101 = vrcp.pop %v98
    %v102 = vmul.f32 1.0, %v101
    %v103 = vrcp.pop %v100
    %v104 = vmul.f32 1.0, %v103
    %v105 = vlog2.pop %v94
    %v106 = vmul.f32 %v105, 0.6931472
    %v107 = vlog2.pop %v96
    %v108 = vmul.f32 %v107, 0.6931472
    %v109 = vlog2.pop %v98
    %v110 = vmul.f32 %v109, 0.6931472
    %v111 = vlog2.pop %v100
    %v112 = vmul.f32 %v111, 0.6931472
    %v113 = vsub.f32 %v106, %v110
    %v114 = vsub.f32 %v108, %v112
    %v115 = vmul.f32 %v113, %v102
    %v116 = vmul.f32 %v114, %v104
    %v117 = vsub.f32 %v83, %v81
    %v118 = vsub.f32 %v84, %v82
    %v119 = vmul.f32 %v117, %v102
    %v120 = vmul.f32 %v118, %v104
    %v121 = vadd.f32 %v119, %v115
    %v122 = vadd.f32 %v120, %v116
    %v123 = vmul.f32 %v90, %v121
    %v124 = vmul.f32 %v92, %v122
    %s125 = sadd.s32 0, 0
    %s126 = smul.u32 %s125, 16
    %s127 = ssub.s32 16, %s126
    %p128 = scmp.ge.s32.totalorder %s127, 16
    // Predicated region
    $region22: #{tpu_custom_call.1} parent=1 // pred_check
      %p129 = pneg %p128
    $region23: #{tpu_custom_call.1} parent=1 // pred_check_branch
      %131 = sbr.rel (%p129) target = $region25
    $region24: #{tpu_custom_call.1} parent=1 // pred_region
      %v132 = vld [vmem:[#allocation2] sm:$0xff]
      %v133 = vadd.f32 %v123, %v124
      %v134 = vadd.f32 %v132, %v133
      %135 = vst [vmem:[#allocation2] sm:$0xff] %v134
    $region25: #{tpu_custom_call.1} parent=1 // pred_fallthru
      _
    %p136 = scmp.lt.s32.totalorder %s127, 16
    // Predicated region
    $region26: #{tpu_custom_call.1} parent=1 // pred_check
      %p137 = pneg %p136
    $region27: #{tpu_custom_call.1} parent=1 // pred_check_branch
      %139 = sbr.rel (%p137) target = $region29
    $region28: #{tpu_custom_call.1} parent=1 // pred_region
      %v140 = vlaneseq
      %v141 = vshrl.u32 %v140, 7
      %v142 = vadd.s32 %v141, 8
      %v143 = vstv %s127
      %vm144 = vcmp.lt.s32.totalorder %v141, %v143
      %vm145 = vcmp.lt.s32.totalorder %v142, %v143
      %v146 = vsel %vm144, 1, 0
      %v147 = vsel %vm145, 1, 0
      %vm148 = vcmp.eq.s32.totalorder %v146, 1
      %vm149 = vcmp.eq.s32.totalorder %v147, 1
      %v150 = vsel %vm148, %v123, 0.0
      %v151 = vsel %vm149, %v124, 0.0
      %v152 = vld [vmem:[#allocation2] sm:$0xff]
      %v153 = vadd.f32 %v150, %v151
      %v154 = vadd.f32 %v152, %v153
      %155 = vst [vmem:[#allocation2] sm:$0xff] %v154
    $region29: #{tpu_custom_call.1} parent=1 // pred_fallthru
      _
    // Predicated region
    $region30: #{tpu_custom_call.1} parent=1 // pred_check
      %p156 = pneg %p60
    $region31: #{tpu_custom_call.1} parent=1 // pred_check_branch
      %158 = sbr.rel (%p156) target = $region33
    $region32: #{tpu_custom_call.1} parent=1 // pred_region
      %v159 = vld [vmem:[#allocation2] sm:$0xff]
      %160 = vadd.xlane.f32.xlu0 %v159
      %v161 = vpop.xlane.xlu0 %160
      %v162 = vrot.slane %v161, 4
      %v163 = vadd.f32 %v161, %v162
      %v164 = vrot.slane %v163, 2
      %v165 = vadd.f32 %v163, %v164
      %v166 = vrot.slane %v165, 1
      %v167 = vadd.f32 %v165, %v166
      %s168 = vtos %v167
      %s169 = smul.f32 %s168, 0.25
      %v170 = vstv %s169
      %171 = vst [vmem:[#allocation8] sm:$0xff] %v170
    $region33: #{tpu_custom_call.1} parent=1 // pred_fallthru
      _
    // Predicated region
    $region34: #{tpu_custom_call.1} parent=1 // pred_check
      _
    $region35: #{tpu_custom_call.1} parent=1 // pred_check_branch
      %173 = sbr.rel (0) target = $region37
    $region36: #{tpu_custom_call.1} parent=1 // pred_region
      %s175 = ssub.s32 128, 128
      %176 = vsyncadd [#allocation5], %s175
      %s178 = sshll.u32 [#allocation8], 4
      %s179 = int_to_ptr.vmem [resolvable:$true] %s178
      %181 = dma.vmem_to_hbm [thread:$0]  %s179, 128, %s2, [#allocation5]
    $region37: #{tpu_custom_call.1} parent=1 // pred_fallthru
      _
    // Predicated region
    $region38: #{tpu_custom_call.1} parent=1 // pred_check
      _
    $region39: #{tpu_custom_call.1} parent=1 // pred_check_branch
      %183 = sbr.rel (0) target = $region41
    $region40: #{tpu_custom_call.1} parent=1 // pred_region
      %184 = dma.done [#allocation5], 128
    $region41: #{tpu_custom_call.1} parent=1 // pred_fallthru
      _
    %185 = vsyncpa [#allocation4], 1
    %186 = vsyncpa [#allocation7], 1
    %187 = vsyncpa [#allocation5], 1

</llo_original>
